<compile_context>
chip_gen: v7x
topology: tpu7x:2x2x1
jax: 0.10.0
libtpu: 0.0.40
codegen_flags: <defaults>
</compile_context>

<pallas_src>
import functools

import jax
import jax.numpy as jnp
from jax import lax
from jax.experimental import pallas as pl
from jax.experimental.pallas import tpu as pltpu


def _round_up(x, m):
    return (x + m - 1) // m * m


def _cdiv(a, b):
    return (a + b - 1) // b


# ----------------------------------------------------------------------------
# Shared tile computation: partial-conv output for one (tm, Cpad) tile (f32).
# ----------------------------------------------------------------------------
def _pconv_out_tile(xp_ref, msum_ref, w_ref, bias_row, slide_winsize):
    # bf16 x bf16 -> f32 MXU matmul on pre-masked patches.
    dot = jnp.dot(xp_ref[...], w_ref[...], preferred_element_type=jnp.float32)
    msum = msum_ref[...]                                      # (tm, 1) f32
    update_mask = jnp.clip(msum, 0.0, 1.0)
    # EUP reciprocal (approx) instead of a VALU divide sequence.
    mask_ratio = (slide_winsize * pl.reciprocal(msum + 1e-8, approx=True)
                  * update_mask)
    # ((raw - b)*ratio + b)*um  ==  (dot*ratio + b)*um   since raw = dot + b
    return (dot * mask_ratio + bias_row) * update_mask        # (tm, Cpad) f32


# ----------------------------------------------------------------------------
# Path A (small K): recompute the pconv tile in both passes.
# ----------------------------------------------------------------------------
def _stats_recompute_kernel(xp_ref, msum_ref, w_ref, b_ref, stats_ref, *,
                            slide_winsize):
    out = _pconv_out_tile(xp_ref, msum_ref, w_ref, b_ref[...], slide_winsize)
    stats_ref[0:1, :] = jnp.sum(out, axis=0, keepdims=True)
    stats_ref[1:2, :] = jnp.sum(out * out, axis=0, keepdims=True)
    # rows 2..7 of the stats tile are never read by the wrapper.


def _apply_recompute_kernel(xp_ref, msum_ref, w_ref, params_ref, out_ref, *,
                            slide_winsize):
    bias = params_ref[0:1, :]                                 # (1, Cpad)
    scale = params_ref[1:2, :]
    shift = params_ref[2:3, :]
    out = _pconv_out_tile(xp_ref, msum_ref, w_ref, bias, slide_winsize)
    out_ref[...] = jnp.maximum(out * scale + shift, 0.0)


# ----------------------------------------------------------------------------
# Path B (large K): pass 1 stores the raw pconv tile (bf16) + stats,
#                   pass 2 is a pure elementwise BN-affine + ReLU.
# ----------------------------------------------------------------------------
def _stats_store_kernel(xp_ref, msum_ref, w_ref, b_ref, raw_ref, stats_ref, *,
                        slide_winsize):
    out = _pconv_out_tile(xp_ref, msum_ref, w_ref, b_ref[...], slide_winsize)
    raw = out.astype(jnp.bfloat16)
    raw_ref[...] = raw
    # Stats of the *stored* (bf16-rounded) values, so pass 2 normalises exactly
    # what these statistics describe.
    outr = raw.astype(jnp.float32)
    stats_ref[0:1, :] = jnp.sum(outr, axis=0, keepdims=True)
    stats_ref[1:2, :] = jnp.sum(outr * outr, axis=0, keepdims=True)


def _affine_relu_kernel(raw_ref, params_ref, out_ref):
    scale = params_ref[1:2, :]
    shift = params_ref[2:3, :]
    out_ref[...] = jnp.maximum(
        raw_ref[...].astype(jnp.float32) * scale + shift, 0.0)


# ----------------------------------------------------------------------------
# JAX glue: bf16 im2col + two pallas_call passes + reshape back to NCHW
# ----------------------------------------------------------------------------
def _extract_patches_nhwc(x_nhwc, k, stride, pad):
    """(N,H,W,C) -> (N*Hout*Wout, k*k*C), patch order (ky, kx, c)."""
    n, h, w, c = x_nhwc.shape
    xp = jnp.pad(x_nhwc, ((0, 0), (pad, pad), (pad, pad), (0, 0)))
    hout = (h + 2 * pad - k) // stride + 1
    wout = (w + 2 * pad - k) // stride + 1
    cols = []
    for dy in range(k):
        for dx in range(k):
            cols.append(xp[:, dy:dy + stride * hout:stride,
                           dx:dx + stride * wout:stride, :])
    patches = jnp.stack(cols, axis=3)                         # (N,Hout,Wout,k*k,C)
    return patches.reshape(n * hout * wout, k * k * c), hout, wout


def _choose_tile_m(m_rows, k_dim, cpad):
    """Largest M tile under a ~20 MiB double-buffered VMEM budget, with
    minimal padding and >= 2 tiles whenever possible (v7x megacore)."""
    # Conservative per-row bytes: xp (bf16) + f32 out + bf16 raw + msum lane-pad,
    # all double-buffered.  Weight/param blocks are grid-invariant and small.
    per_row = 2 * (k_dim * 2 + cpad * 4 + cpad * 2 + 128 * 4)
    budget = 20 * 1024 * 1024
    tm_cap = max(16, min(2048, (budget // per_row) // 16 * 16))
    min_tiles = 2 if m_rows >= 32 else 1
    num_tiles = max(min_tiles, _cdiv(m_rows, tm_cap))
    tm = _round_up(_cdiv(m_rows, num_tiles), 16)
    num_tiles = max(min_tiles, _cdiv(m_rows, tm))
    return tm, num_tiles


@functools.partial(jax.jit, static_argnames=("kernel_size", "stride"))
def pconv_encoder_forward(img_nchw, mask_nchw, weight_oihw, bias, gamma, beta,
                          *, kernel_size, stride=2):
    n, cin, h, w = img_nchw.shape
    cout = weight_oihw.shape[0]
    k = kernel_size
    pad = (k - 1) // 2          # NOTE: matches the module; assumes odd kernel_size
    k_dim = k * k * cin

    # ---- wrapper-side prep (layout only, bf16 intermediates) ----------------
    # TODO(synk): move im2col into the kernel via manual DMA of the padded NHWC
    # image to avoid materialising the inflated patch array in HBM.
    xm_nhwc = jnp.transpose(img_nchw * mask_nchw, (0, 2, 3, 1)).astype(jnp.bfloat16)
    xp, hout, wout = _extract_patches_nhwc(xm_nhwc, k, stride, pad)   # (M,K) bf16
    m_rows = n * hout * wout

    # Mask window coverage: one scalar per output position (== ones-kernel conv).
    mc = jnp.sum(mask_nchw.astype(jnp.float32), axis=1)               # (N, H, W)
    msum = lax.reduce_window(mc, 0.0, lax.add,
                             window_dimensions=(1, k, k),
                             window_strides=(1, stride, stride),
                             padding=((0, 0), (pad, pad), (pad, pad)))
    msum_col = msum.reshape(m_rows, 1)

    cpad = _round_up(cout, 128)                 # lane-dense output/params
    tm, num_tiles = _choose_tile_m(m_rows, k_dim, cpad)
    m_pad = num_tiles * tm

    xp_b = jnp.pad(xp, ((0, m_pad - m_rows), (0, 0)))                 # bf16
    msum_p = jnp.pad(msum_col, ((0, m_pad - m_rows), (0, 0))).astype(jnp.float32)

    # (Cout,Cin,kh,kw) -> (kh,kw,Cin,Cout) -> (K, Cout) -> zero-pad lanes to Cpad
    w_mat = jnp.transpose(weight_oihw, (2, 3, 1, 0)).reshape(k_dim, cout)
    w_b = jnp.pad(w_mat, ((0, 0), (0, cpad - cout))).astype(jnp.bfloat16)
    b_row = jnp.pad(bias.astype(jnp.float32), (0, cpad - cout)).reshape(1, cpad)

    slide = float(k_dim)                        # multi_channel: Cin*k*k

    # Gate: second xp read (K*2B/row) vs bf16 raw write+read (~Cpad*6B/row).
    store_raw = (k_dim * 2) > (cpad * 6)

    cparams = pltpu.CompilerParams(dimension_semantics=("parallel",))
    # Per-tile VMEM is kept < ~20 MiB by _choose_tile_m, so the default 32 MiB
    # scoped VMEM limit suffices on v5e/v6e/v7x (no vmem_limit_bytes override).

    xp_spec = pl.BlockSpec((tm, k_dim), lambda i: (i, 0))
    msum_spec = pl.BlockSpec((tm, 1), lambda i: (i, 0))
    w_spec = pl.BlockSpec((k_dim, cpad), lambda i: (0, 0))
    row_spec = pl.BlockSpec((1, cpad), lambda i: (0, 0))
    par_spec = pl.BlockSpec((8, cpad), lambda i: (0, 0))
    stats_spec = pl.BlockSpec((8, cpad), lambda i: (i, 0))
    big_spec = pl.BlockSpec((tm, cpad), lambda i: (i, 0))

    stats_shape = jax.ShapeDtypeStruct((num_tiles * 8, cpad), jnp.float32)

    # ---- pass 1: per-tile partial BN statistics (+ bf16 raw for large K) ----
    if store_raw:
        raw_p, stats = pl.pallas_call(
            functools.partial(_stats_store_kernel, slide_winsize=slide),
            grid=(num_tiles,),
            in_specs=[xp_spec, msum_spec, w_spec, row_spec],
            out_specs=(big_spec, stats_spec),
            out_shape=(jax.ShapeDtypeStruct((m_pad, cpad), jnp.bfloat16),
                       stats_shape),
            compiler_params=cparams,
        )(xp_b, msum_p, w_b, b_row)
    else:
        stats = pl.pallas_call(
            functools.partial(_stats_recompute_kernel, slide_winsize=slide),
            grid=(num_tiles,),
            in_specs=[xp_spec, msum_spec, w_spec, row_spec],
            out_specs=stats_spec,
            out_shape=stats_shape,
            compiler_params=cparams,
        )(xp_b, msum_p, w_b, b_row)

    stats = stats.reshape(num_tiles, 8, cpad)
    total_sum = jnp.sum(stats[:, 0, :], axis=0)
    total_sq = jnp.sum(stats[:, 1, :], axis=0)
    mean = total_sum / m_rows                                 # padded rows are 0
    var = jnp.maximum(total_sq / m_rows - mean * mean, 0.0)   # biased (train) var
    # TODO(synk): for very large M, switch to per-tile centered partial stats to
    # avoid E[x^2]-E[x]^2 cancellation in f32.

    gamma_p = jnp.pad(gamma.astype(jnp.float32), (0, cpad - cout))
    beta_p = jnp.pad(beta.astype(jnp.float32), (0, cpad - cout))
    scale = gamma_p * lax.rsqrt(var + 1e-5)
    shift = beta_p - mean * scale
    params = (jnp.zeros((8, cpad), jnp.float32)
              .at[0].set(b_row[0]).at[1].set(scale).at[2].set(shift))

    # ---- pass 2: BN affine + ReLU ------------------------------------------
    if store_raw:
        out_p = pl.pallas_call(
            _affine_relu_kernel,
            grid=(num_tiles,),
            in_specs=[big_spec, par_spec],
            out_specs=big_spec,
            out_shape=jax.ShapeDtypeStruct((m_pad, cpad), jnp.float32),
            compiler_params=cparams,
        )(raw_p, params)
    else:
        out_p = pl.pallas_call(
            functools.partial(_apply_recompute_kernel, slide_winsize=slide),
            grid=(num_tiles,),
            in_specs=[xp_spec, msum_spec, w_spec, par_spec],
            out_specs=big_spec,
            out_shape=jax.ShapeDtypeStruct((m_pad, cpad), jnp.float32),
            compiler_params=cparams,
        )(xp_b, msum_p, w_b, params)

    out = out_p[:m_rows, :cout].reshape(n, hout, wout, cout)
    out_nchw = jnp.transpose(out, (0, 3, 1, 2))

    # updated mask = clip(msum, 0, 1), identical across Cout channels
    um = jnp.clip(msum, 0.0, 1.0)                             # (N, Hout, Wout)
    mask_out = jnp.broadcast_to(um[:, None, :, :], (n, cout, hout, wout))
    return out_nchw, mask_out


# ----------------------------------------------------------------------------
# Pure-JAX reference (mirrors the PyTorch forward; same bf16-rounded operands)
# ----------------------------------------------------------------------------
def _reference(img, mask, weight, bias, gamma, beta, *, kernel_size, stride=2):
    k = kernel_size
    pad = (k - 1) // 2
    cin = img.shape[1]
    dn = ("NCHW", "OIHW", "NCHW")
    xm = (img * mask).astype(jnp.bfloat16).astype(jnp.float32)
    wq = weight.astype(jnp.bfloat16).astype(jnp.float32)
    raw = lax.conv_general_dilated(xm, wq, (stride, stride),
                                   [(pad, pad), (pad, pad)],
                                   dimension_numbers=dn)
    msum = lax.conv_general_dilated(mask, jnp.ones_like(weight), (stride, stride),
                                    [(pad, pad), (pad, pad)],
                                    dimension_numbers=dn)
    slide = float(cin * k * k)
    um = jnp.clip(msum, 0.0, 1.0)
    ratio = (slide / (msum + 1e-8)) * um
    b4 = bias[None, :, None, None]
    out = (raw * ratio + b4) * um
    mean = out.mean(axis=(0, 2, 3), keepdims=True)
    var = ((out - mean) ** 2).mean(axis=(0, 2, 3), keepdims=True)
    out = (out - mean) * lax.rsqrt(var + 1e-5) * gamma[None, :, None, None] \
        + beta[None, :, None, None]
    return jnp.maximum(out, 0.0), um


def _run_case(seed, n, cin, cout, h, w, k, atol, rtol):
    key = jax.random.PRNGKey(seed)
    k_img, k_mask, k_w, k_b, k_g, k_be = jax.random.split(key, 6)

    img = jax.random.normal(k_img, (n, cin, h, w), dtype=jnp.float32)
    mask = (jax.random.uniform(k_mask, (n, cin, h, w)) > 0.4).astype(jnp.float32)

    weight = 0.1 * jax.random.normal(k_w, (cout, cin, k, k), dtype=jnp.float32)
    bias = 0.1 * jax.random.normal(k_b, (cout,), dtype=jnp.float32)
    gamma = 1.0 + 0.1 * jax.random.normal(k_g, (cout,), dtype=jnp.float32)
    beta = 0.1 * jax.random.normal(k_be, (cout,), dtype=jnp.float32)

    out, mask_out = pconv_encoder_forward(
        img, mask, weight, bias, gamma, beta, kernel_size=k, stride=2)
    out = jax.block_until_ready(out)
    mask_out = jax.block_until_ready(mask_out)

    ref_out, ref_mask = _reference(
        img, mask, weight, bias, gamma, beta, kernel_size=k, stride=2)

    assert out.shape == (n, cout, h // 2, w // 2)
    assert mask_out.shape == (n, cout, h // 2, w // 2)
    assert jnp.allclose(out, ref_out, atol=atol, rtol=rtol), \
        float(jnp.max(jnp.abs(out - ref_out)))
    assert jnp.allclose(mask_out, ref_mask, atol=1e-5, rtol=1e-5)


if __name__ == "__main__":
    # Case 1: small first-layer-like shape -> small-K "recompute" path.
    _run_case(seed=0, n=2, cin=4, cout=8, h=16, w=16, k=3, atol=3e-3, rtol=3e-3)
    # Case 2: wider Cin -> large-K "store raw bf16" path (pass 2 elementwise).
    # Tolerance accounts for bf16 (2^-8 relative) rounding of the pre-BN tile.
    _run_case(seed=0, n=2, cin=64, cout=16, h=16, w=16, k=3, atol=6e-3, rtol=6e-3)

    print("KERNEL_OK")
</pallas_src>

<mosaic_0001>
module attributes {stable_mosaic.version = 11 : i64} {
  func.func @_stats_recompute_kernel(%arg0: i32, %arg1: memref<64x36xbf16, #tpu.memory_space<vmem>>, %arg2: memref<64x1xf32, #tpu.memory_space<vmem>>, %arg3: memref<36x128xbf16, #tpu.memory_space<vmem>>, %arg4: memref<1x128xf32, #tpu.memory_space<vmem>>, %arg5: memref<8x128xf32, #tpu.memory_space<vmem>>) attributes {dimension_semantics = [#tpu.dimension_semantics<parallel>], iteration_bounds = array<i64: 2>, scalar_prefetch = 0 : i64, scratch_operands = 0 : i64, tpu.core_type = #tpu.core_type<tc>, window_params = [{transform_indices = @transform_0, window_bounds = array<i64: 64, 36>}, {transform_indices = @transform_1, window_bounds = array<i64: 64, 1>}, {pipeline_mode = #tpu.pipeline_mode<synchronous>, transform_indices = @transform_2, window_bounds = array<i64: 36, 128>}, {pipeline_mode = #tpu.pipeline_mode<synchronous>, transform_indices = @transform_3, window_bounds = array<i64: 1, 128>}, {transform_indices = @transform_4, window_bounds = array<i64: 8, 128>}]} {
    %c0 = arith.constant 0 : index
    %c0_0 = arith.constant 0 : index
    %0 = vector.load %arg4[%c0, %c0_0] : memref<1x128xf32, #tpu.memory_space<vmem>>, vector<1x128xf32>
    %c0_1 = arith.constant 0 : index
    %c0_2 = arith.constant 0 : index
    %1 = vector.load %arg1[%c0_1, %c0_2] : memref<64x36xbf16, #tpu.memory_space<vmem>>, vector<64x36xbf16>
    %c0_3 = arith.constant 0 : index
    %c0_4 = arith.constant 0 : index
    %2 = vector.load %arg3[%c0_3, %c0_4] : memref<36x128xbf16, #tpu.memory_space<vmem>>, vector<36x128xbf16>
    %cst = arith.constant dense<0.000000e+00> : vector<64x128xf32>
    %3 = tpu.matmul %1, %2, %cst {dimension_numbers = #tpu.dot_dimension_numbers<[1], [0], [0], [1], [0, 0, 1, 1], [], []>} : vector<64x36xbf16>, vector<36x128xbf16>, vector<64x128xf32> -> vector<64x128xf32>
    %c0_5 = arith.constant 0 : index
    %c0_6 = arith.constant 0 : index
    %4 = vector.load %arg2[%c0_5, %c0_6] : memref<64x1xf32, #tpu.memory_space<vmem>>, vector<64x1xf32>
    %cst_7 = arith.constant 0.000000e+00 : f32
    %cst_8 = arith.constant 1.000000e+00 : f32
    %5 = vector.broadcast %cst_7 : f32 to vector<64x1xf32>
    %6 = arith.maximumf %5, %4 : vector<64x1xf32>
    %7 = vector.broadcast %cst_8 : f32 to vector<64x1xf32>
    %8 = arith.minimumf %7, %6 : vector<64x1xf32>
    %cst_9 = arith.constant 9.99999993E-9 : f32
    %9 = vector.broadcast %cst_9 : f32 to vector<64x1xf32>
    %10 = arith.addf %4, %9 : vector<64x1xf32>
    %11 = tpu.reciprocal %10 {approx = true} : vector<64x1xf32> -> vector<64x1xf32>
    %cst_10 = arith.constant 3.600000e+01 : f32
    %12 = vector.broadcast %cst_10 : f32 to vector<64x1xf32>
    %13 = arith.mulf %12, %11 : vector<64x1xf32>
    %14 = arith.mulf %13, %8 : vector<64x1xf32>
    %15 = vector.broadcast %14 : vector<64x1xf32> to vector<64x128xf32>
    %16 = arith.mulf %3, %15 : vector<64x128xf32>
    %17 = vector.broadcast %0 : vector<1x128xf32> to vector<64x128xf32>
    %18 = arith.addf %16, %17 : vector<64x128xf32>
    %19 = vector.broadcast %8 : vector<64x1xf32> to vector<64x128xf32>
    %20 = arith.mulf %18, %19 : vector<64x128xf32>
    %cst_11 = arith.constant dense<0.000000e+00> : vector<128xf32>
    %21 = vector.multi_reduction <add>, %20, %cst_11 [0] : vector<64x128xf32> to vector<128xf32>
    %22 = vector.shape_cast %21 : vector<128xf32> to vector<1x128xf32>
    %c0_12 = arith.constant 0 : index
    %c0_13 = arith.constant 0 : index
    %23 = vector.load %arg5[%c0_12, %c0_13] : memref<8x128xf32, #tpu.memory_space<vmem>>, vector<1x128xf32>
    tpu.vector_store %arg5[%c0_12, %c0_13], %22 {strides = array<i32>} : memref<8x128xf32, #tpu.memory_space<vmem>>, vector<1x128xf32>,
    %24 = arith.mulf %20, %20 : vector<64x128xf32>
    %cst_14 = arith.constant dense<0.000000e+00> : vector<128xf32>
    %25 = vector.multi_reduction <add>, %24, %cst_14 [0] : vector<64x128xf32> to vector<128xf32>
    %26 = vector.shape_cast %25 : vector<128xf32> to vector<1x128xf32>
    %c1 = arith.constant 1 : index
    %c0_15 = arith.constant 0 : index
    %27 = vector.load %arg5[%c1, %c0_15] : memref<8x128xf32, #tpu.memory_space<vmem>>, vector<1x128xf32>
    tpu.vector_store %arg5[%c1, %c0_15], %26 {strides = array<i32>} : memref<8x128xf32, #tpu.memory_space<vmem>>, vector<1x128xf32>,
    return
  }
  func.func @transform_0(%arg0: i32) -> (i32, i32) {
    %c0_i32 = arith.constant 0 : i32
    %c0_i32_0 = arith.constant 0 : i32
    return %arg0, %c0_i32 : i32, i32
  }
  func.func @transform_1(%arg0: i32) -> (i32, i32) {
    %c0_i32 = arith.constant 0 : i32
    %c0_i32_0 = arith.constant 0 : i32
    return %arg0, %c0_i32 : i32, i32
  }
  func.func @transform_2(%arg0: i32) -> (i32, i32) {
    %c0_i32 = arith.constant 0 : i32
    %c0_i32_0 = arith.constant 0 : i32
    %c0_i32_1 = arith.constant 0 : i32
    return %c0_i32, %c0_i32_0 : i32, i32
  }
  func.func @transform_3(%arg0: i32) -> (i32, i32) {
    %c0_i32 = arith.constant 0 : i32
    %c0_i32_0 = arith.constant 0 : i32
    %c0_i32_1 = arith.constant 0 : i32
    return %c0_i32, %c0_i32_0 : i32, i32
  }
  func.func @transform_4(%arg0: i32) -> (i32, i32) {
    %c0_i32 = arith.constant 0 : i32
    %c0_i32_0 = arith.constant 0 : i32
    return %arg0, %c0_i32 : i32, i32
  }
}

module attributes {stable_mosaic.version = 11 : i64} {
  func.func @_apply_recompute_kernel(%arg0: i32, %arg1: memref<64x36xbf16, #tpu.memory_space<vmem>>, %arg2: memref<64x1xf32, #tpu.memory_space<vmem>>, %arg3: memref<36x128xbf16, #tpu.memory_space<vmem>>, %arg4: memref<8x128xf32, #tpu.memory_space<vmem>>, %arg5: memref<64x128xf32, #tpu.memory_space<vmem>>) attributes {dimension_semantics = [#tpu.dimension_semantics<parallel>], iteration_bounds = array<i64: 2>, scalar_prefetch = 0 : i64, scratch_operands = 0 : i64, tpu.core_type = #tpu.core_type<tc>, window_params = [{transform_indices = @transform_0, window_bounds = array<i64: 64, 36>}, {transform_indices = @transform_1, window_bounds = array<i64: 64, 1>}, {pipeline_mode = #tpu.pipeline_mode<synchronous>, transform_indices = @transform_2, window_bounds = array<i64: 36, 128>}, {pipeline_mode = #tpu.pipeline_mode<synchronous>, transform_indices = @transform_3, window_bounds = array<i64: 8, 128>}, {transform_indices = @transform_4, window_bounds = array<i64: 64, 128>}]} {
    %c0 = arith.constant 0 : index
    %c0_0 = arith.constant 0 : index
    %0 = vector.load %arg4[%c0, %c0_0] : memref<8x128xf32, #tpu.memory_space<vmem>>, vector<1x128xf32>
    %c1 = arith.constant 1 : index
    %c0_1 = arith.constant 0 : index
    %1 = vector.load %arg4[%c1, %c0_1] : memref<8x128xf32, #tpu.memory_space<vmem>>, vector<1x128xf32>
    %c2 = arith.constant 2 : index
    %c0_2 = arith.constant 0 : index
    %2 = vector.load %arg4[%c2, %c0_2] : memref<8x128xf32, #tpu.memory_space<vmem>>, vector<1x128xf32>
    %c0_3 = arith.constant 0 : index
    %c0_4 = arith.constant 0 : index
    %3 = vector.load %arg1[%c0_3, %c0_4] : memref<64x36xbf16, #tpu.memory_space<vmem>>, vector<64x36xbf16>
    %c0_5 = arith.constant 0 : index
    %c0_6 = arith.constant 0 : index
    %4 = vector.load %arg3[%c0_5, %c0_6] : memref<36x128xbf16, #tpu.memory_space<vmem>>, vector<36x128xbf16>
    %cst = arith.constant dense<0.000000e+00> : vector<64x128xf32>
    %5 = tpu.matmul %3, %4, %cst {dimension_numbers = #tpu.dot_dimension_numbers<[1], [0], [0], [1], [0, 0, 1, 1], [], []>} : vector<64x36xbf16>, vector<36x128xbf16>, vector<64x128xf32> -> vector<64x128xf32>
    %c0_7 = arith.constant 0 : index
    %c0_8 = arith.constant 0 : index
    %6 = vector.load %arg2[%c0_7, %c0_8] : memref<64x1xf32, #tpu.memory_space<vmem>>, vector<64x1xf32>
    %cst_9 = arith.constant 0.000000e+00 : f32
    %cst_10 = arith.constant 1.000000e+00 : f32
    %7 = vector.broadcast %cst_9 : f32 to vector<64x1xf32>
    %8 = arith.maximumf %7, %6 : vector<64x1xf32>
    %9 = vector.broadcast %cst_10 : f32 to vector<64x1xf32>
    %10 = arith.minimumf %9, %8 : vector<64x1xf32>
    %cst_11 = arith.constant 9.99999993E-9 : f32
    %11 = vector.broadcast %cst_11 : f32 to vector<64x1xf32>
    %12 = arith.addf %6, %11 : vector<64x1xf32>
    %13 = tpu.reciprocal %12 {approx = true} : vector<64x1xf32> -> vector<64x1xf32>
    %cst_12 = arith.constant 3.600000e+01 : f32
    %14 = vector.broadcast %cst_12 : f32 to vector<64x1xf32>
    %15 = arith.mulf %14, %13 : vector<64x1xf32>
    %16 = arith.mulf %15, %10 : vector<64x1xf32>
    %17 = vector.broadcast %16 : vector<64x1xf32> to vector<64x128xf32>
    %18 = arith.mulf %5, %17 : vector<64x128xf32>
    %19 = vector.broadcast %0 : vector<1x128xf32> to vector<64x128xf32>
    %20 = arith.addf %18, %19 : vector<64x128xf32>
    %21 = vector.broadcast %10 : vector<64x1xf32> to vector<64x128xf32>
    %22 = arith.mulf %20, %21 : vector<64x128xf32>
    %23 = vector.broadcast %1 : vector<1x128xf32> to vector<64x128xf32>
    %24 = arith.mulf %22, %23 : vector<64x128xf32>
    %25 = vector.broadcast %2 : vector<1x128xf32> to vector<64x128xf32>
    %26 = arith.addf %24, %25 : vector<64x128xf32>
    %cst_13 = arith.constant 0.000000e+00 : f32
    %27 = vector.broadcast %cst_13 : f32 to vector<64x128xf32>
    %28 = arith.maximumf %26, %27 : vector<64x128xf32>
    %c0_14 = arith.constant 0 : index
    %c0_15 = arith.constant 0 : index
    %29 = vector.load %arg5[%c0_14, %c0_15] : memref<64x128xf32, #tpu.memory_space<vmem>>, vector<64x128xf32>
    tpu.vector_store %arg5[%c0_14, %c0_15], %28 {strides = array<i32>} : memref<64x128xf32, #tpu.memory_space<vmem>>, vector<64x128xf32>,
    return
  }
  func.func @transform_0(%arg0: i32) -> (i32, i32) {
    %c0_i32 = arith.constant 0 : i32
    %c0_i32_0 = arith.constant 0 : i32
    return %arg0, %c0_i32 : i32, i32
  }
  func.func @transform_1(%arg0: i32) -> (i32, i32) {
    %c0_i32 = arith.constant 0 : i32
    %c0_i32_0 = arith.constant 0 : i32
    return %arg0, %c0_i32 : i32, i32
  }
  func.func @transform_2(%arg0: i32) -> (i32, i32) {
    %c0_i32 = arith.constant 0 : i32
    %c0_i32_0 = arith.constant 0 : i32
    %c0_i32_1 = arith.constant 0 : i32
    return %c0_i32, %c0_i32_0 : i32, i32
  }
  func.func @transform_3(%arg0: i32) -> (i32, i32) {
    %c0_i32 = arith.constant 0 : i32
    %c0_i32_0 = arith.constant 0 : i32
    %c0_i32_1 = arith.constant 0 : i32
    return %c0_i32, %c0_i32_0 : i32, i32
  }
  func.func @transform_4(%arg0: i32) -> (i32, i32) {
    %c0_i32 = arith.constant 0 : i32
    %c0_i32_0 = arith.constant 0 : i32
    return %arg0, %c0_i32 : i32, i32
  }
}

</mosaic_0001>

<llo_original>
// kernel: pconv_encoder_forward.3
$region0: #{pconv_encoder_forward.3}
  #allocation0 [shape = 'u32[]', space=smem, size = 0x4, offset = 0x4, fixed_abs, tag = 'smem constant byte address 0x4 - core index']
  #allocation1 [shape = 'u32[144,128]{1,0:T(1,128)}', space=vmem, size = 0x12000, scoped, tag = 'internal scratch']
  %s0 = inlined_call_operand.vmem [shape: bf16[128,36], index: 0, kind: input, shape index: {}]
  %s1 = inlined_call_operand.vmem [shape: f32[128,1], index: 1, kind: input, shape index: {}]
  %s2 = inlined_call_operand.vmem [shape: bf16[36,128], index: 2, kind: input, shape index: {}]
  %s3 = inlined_call_operand.vmem [shape: f32[8,128], index: 3, kind: input, shape index: {}]
  %s4 = inlined_call_operand.vmem [shape: f32[128,128], index: 4, kind: output, shape index: {}]
  %s5 = sld [smem:[#allocation0]]
  $region49: #{pconv_encoder_forward.3} parent=0
    _
  %s7 = ssub.s32 1, %s5
  %s8 = scalar_select 0, %s7, %s5
  loop: start=0, step=1, limit=4
  $region2: #{pconv_encoder_forward.3} parent=0 // loop_pre_header
    _
  $region3: #{pconv_encoder_forward.3} parent=0 // loop_header
    %s10 = sphi 0, %s14
    %p11 = scmp.ge.s32.totalorder %s10, 4
    %s20 = sphi 0, %s22
    %s23 = sphi 0, %s20
    %s24 = sphi 0, %s23
    %s40 = sphi 0, %s24
    %s46 = sphi 0, %s48
    %s49 = sphi 0, %s46
    %s50 = sphi 0, %s49
    %s66 = sphi 0, %s50
    %s70 = sphi 0, %s70
    %s72 = sphi 0, %s70
    %s73 = sphi 0, %s72
    %s87 = sphi 0, %s73
    %s91 = sphi 0, %s91
    %s93 = sphi 0, %s91
    %s94 = sphi 0, %s93
    %s108 = sphi 0, %s94
    %s114 = sphi 0, %s116
    %s117 = sphi 0, %s114
    %s118 = sphi 0, %s117
    %s134 = sphi 0, %s118
  $region4: #{pconv_encoder_forward.3} parent=0 // loop_header_branch
    %13 = sbr.rel (%p11) target = $region8
  $region5: #{pconv_encoder_forward.3} parent=0 // loop_body
    %s15 = ssub.s32 %s10, 1
    %s16 = ssub.s32 %s10, 2
    %s17 = sadd.s32 %s10, 1
    %s18 = ssub.s32 %s10, %s17
    %p19 = scmp.eq.s32.totalorder %s18, 0
    %s21 = sadd.s32 %s20, 1
    %s22 = scalar_select %p19, %s20, %s21
    %p25 = pneg %p19
    %p26 = scmp.eq.s32.totalorder %s10, 1
    %p27 = por %p25, %p26
    %p28 = scmp.ne.s32.totalorder %s20, %s23
    %p29 = scmp.eq.s32.totalorder %s10, 0
    %p30 = por %p28, %p29
    %p31 = scmp.ne.s32.totalorder %s20, %s23
    %p32 = scmp.eq.s32.totalorder %s15, 1
    %p33 = por %p31, %p32
    %p34 = scmp.ne.s32.totalorder %s23, %s24
    %p35 = scmp.eq.s32.totalorder %s15, 0
    %p36 = por %p34, %p35
    %p37 = scmp.ne.s32.totalorder %s23, %s24
    %p38 = scmp.eq.s32.totalorder %s16, 1
    %p39 = por %p37, %p38
    %p41 = scmp.ne.s32.totalorder %s24, %s40
    %p42 = scmp.eq.s32.totalorder %s16, 0
    %p43 = por %p41, %p42
    %s44 = ssub.s32 %s10, %s17
    %p45 = scmp.eq.s32.totalorder %s44, 0
    %s47 = sadd.s32 %s46, 1
    %s48 = scalar_select %p45, %s46, %s47
    %p51 = pneg %p45
    %p52 = scmp.eq.s32.totalorder %s10, 1
    %p53 = por %p51, %p52
    %p54 = scmp.ne.s32.totalorder %s46, %s49
    %p55 = scmp.eq.s32.totalorder %s10, 0
    %p56 = por %p54, %p55
    %p57 = scmp.ne.s32.totalorder %s46, %s49
    %p58 = scmp.eq.s32.totalorder %s15, 1
    %p59 = por %p57, %p58
    %p60 = scmp.ne.s32.totalorder %s49, %s50
    %p61 = scmp.eq.s32.totalorder %s15, 0
    %p62 = por %p60, %p61
    %p63 = scmp.ne.s32.totalorder %s49, %s50
    %p64 = scmp.eq.s32.totalorder %s16, 1
    %p65 = por %p63, %p64
    %p67 = scmp.ne.s32.totalorder %s50, %s66
    %p68 = scmp.eq.s32.totalorder %s16, 0
    %p69 = por %p67, %p68
    %s71 = sadd.s32 %s70, 1
    %p74 = scmp.eq.s32.totalorder %s10, 1
    %p75 = scmp.ne.s32.totalorder %s70, %s72
    %p76 = scmp.eq.s32.totalorder %s10, 0
    %p77 = por %p75, %p76
    %p78 = scmp.ne.s32.totalorder %s70, %s72
    %p79 = scmp.eq.s32.totalorder %s15, 1
    %p80 = por %p78, %p79
    %p81 = scmp.ne.s32.totalorder %s72, %s73
    %p82 = scmp.eq.s32.totalorder %s15, 0
    %p83 = por %p81, %p82
    %p84 = scmp.ne.s32.totalorder %s72, %s73
    %p85 = scmp.eq.s32.totalorder %s16, 1
    %p86 = por %p84, %p85
    %p88 = scmp.ne.s32.totalorder %s73, %s87
    %p89 = scmp.eq.s32.totalorder %s16, 0
    %p90 = por %p88, %p89
    %s92 = sadd.s32 %s91, 1
    %p95 = scmp.eq.s32.totalorder %s10, 1
    %p96 = scmp.ne.s32.totalorder %s91, %s93
    %p97 = scmp.eq.s32.totalorder %s10, 0
    %p98 = por %p96, %p97
    %p99 = scmp.ne.s32.totalorder %s91, %s93
    %p100 = scmp.eq.s32.totalorder %s15, 1
    %p101 = por %p99, %p100
    %p102 = scmp.ne.s32.totalorder %s93, %s94
    %p103 = scmp.eq.s32.totalorder %s15, 0
    %p104 = por %p102, %p103
    %p105 = scmp.ne.s32.totalorder %s93, %s94
    %p106 = scmp.eq.s32.totalorder %s16, 1
    %p107 = por %p105, %p106
    %p109 = scmp.ne.s32.totalorder %s94, %s108
    %p110 = scmp.eq.s32.totalorder %s16, 0
    %p111 = por %p109, %p110
    %s112 = ssub.s32 %s10, %s17
    %p113 = scmp.eq.s32.totalorder %s112, 0
    %s115 = sadd.s32 %s114, 1
    %s116 = scalar_select %p113, %s114, %s115
    %p119 = pneg %p113
    %p120 = scmp.eq.s32.totalorder %s10, 1
    %p121 = por %p119, %p120
    %p122 = scmp.ne.s32.totalorder %s114, %s117
    %p123 = scmp.eq.s32.totalorder %s10, 0
    %p124 = por %p122, %p123
    %p125 = scmp.ne.s32.totalorder %s114, %s117
    %p126 = scmp.eq.s32.totalorder %s15, 1
    %p127 = por %p125, %p126
    %p128 = scmp.ne.s32.totalorder %s117, %s118
    %p129 = scmp.eq.s32.totalorder %s15, 0
    %p130 = por %p128, %p129
    %p131 = scmp.ne.s32.totalorder %s117, %s118
    %p132 = scmp.eq.s32.totalorder %s16, 1
    %p133 = por %p131, %p132
    %p135 = scmp.ne.s32.totalorder %s118, %s134
    %p136 = scmp.eq.s32.totalorder %s16, 0
    %p137 = por %p135, %p136
    %p138 = scmp.le.s32.totalorder 1, %s10
    %p139 = scmp.lt.s32.totalorder %s10, 3
    %p140 = pnand %p138, %p139
    %p141 = pneg %p140
    // Predicated region
    $region9: #{pconv_encoder_forward.3} parent=5 // pred_check
      _
    $region10: #{pconv_encoder_forward.3} parent=5 // pred_check_branch
      %143 = sbr.rel (%p140) target = $region12
    $region11: #{pconv_encoder_forward.3} parent=5 // pred_region
      %s144 = ssub.s32 %s10, 1
      // Predicated region
      $region13: #{pconv_encoder_forward.3} parent=11 // pred_check
        %p145 = pneg %p83
      $region14: #{pconv_encoder_forward.3} parent=11 // pred_check_branch
        %147 = sbr.rel (%p145) target = $region16
      $region15: #{pconv_encoder_forward.3} parent=11 // pred_region
        _
      $region16: #{pconv_encoder_forward.3} parent=11 // pred_fallthru
        _
      // Predicated region
      $region17: #{pconv_encoder_forward.3} parent=11 // pred_check
        %p148 = pneg %p104
      $region18: #{pconv_encoder_forward.3} parent=11 // pred_check_branch
        %150 = sbr.rel (%p148) target = $region20
      $region19: #{pconv_encoder_forward.3} parent=11 // pred_region
        _
      $region20: #{pconv_encoder_forward.3} parent=11 // pred_fallthru
        _
    $region12: #{pconv_encoder_forward.3} parent=5 // pred_fallthru
      _
    %p151 = scmp.lt.s32.totalorder %s10, 2
    // Predicated region
    $region21: #{pconv_encoder_forward.3} parent=5 // pred_check
      %p152 = pneg %p151
    $region22: #{pconv_encoder_forward.3} parent=5 // pred_check_branch
      %154 = sbr.rel (%p152) target = $region24
    $region23: #{pconv_encoder_forward.3} parent=5 // pred_region
      // Predicated region
      $region25: #{pconv_encoder_forward.3} parent=23 // pred_check
        %p155 = pneg %p30
      $region26: #{pconv_encoder_forward.3} parent=23 // pred_check_branch
        %157 = sbr.rel (%p155) target = $region28
      $region27: #{pconv_encoder_forward.3} parent=23 // pred_region
        %s158 = smul.u32 8, %s10
        %p159 = scmp.lt.s32.totalorder %s158, 15
        %s160 = scalar_select %p159, %s158, 15
        %s161 = smul.addr %s160, 4
        %s162 = scalar_lea.vmem %s0, %s161
        %s163 = smul.u32 8, %s10
      $region28: #{pconv_encoder_forward.3} parent=23 // pred_fallthru
        _
      // Predicated region
      $region29: #{pconv_encoder_forward.3} parent=23 // pred_check
        %p164 = pneg %p56
      $region30: #{pconv_encoder_forward.3} parent=23 // pred_check_branch
        %166 = sbr.rel (%p164) target = $region32
      $region31: #{pconv_encoder_forward.3} parent=23 // pred_region
        %s167 = smul.u32 8, %s10
        %p168 = scmp.lt.s32.totalorder %s167, 15
        %s169 = scalar_select %p168, %s167, 15
        %s170 = smul.addr %s169, 8
        %s171 = scalar_lea.vmem %s1, %s170
        %s172 = smul.u32 8, %s10
      $region32: #{pconv_encoder_forward.3} parent=23 // pred_fallthru
        _
    $region24: #{pconv_encoder_forward.3} parent=5 // pred_fallthru
      _
    %p173 = scmp.le.s32.totalorder 1, %s10
    %p174 = scmp.lt.s32.totalorder %s10, 3
    %p175 = pnand %p173, %p174
    %p176 = pneg %p175
    // Predicated region
    $region33: #{pconv_encoder_forward.3} parent=5 // pred_check
      _
    $region34: #{pconv_encoder_forward.3} parent=5 // pred_check_branch
      %178 = sbr.rel (%p175) target = $region36
    $region35: #{pconv_encoder_forward.3} parent=5 // pred_region
      %s179 = ssub.s32 %s10, 1
      %s180 = smul.u32 8, %s15
      %p181 = scmp.lt.s32.totalorder %s180, 15
      %s182 = scalar_select %p181, %s180, 15
      %s183 = smul.addr %s182, 4
      %s184 = scalar_lea.vmem %s0, %s183
      %p185 = pneg %p36
      %p186 = pneg %p33
      %s187 = smul.u32 8, %s15
      %p188 = scmp.lt.s32.totalorder %s187, 15
      %s189 = scalar_select %p188, %s187, 15
      %s190 = smul.addr %s189, 8
      %s191 = scalar_lea.vmem %s1, %s190
      %p192 = pneg %p62
      %p193 = pneg %p59
      %p194 = pneg %p83
      %p195 = pneg %p80
      %p196 = pneg %p104
      %p197 = pneg %p101
      %p198 = pneg %p130
      %p199 = pneg %p127
      %s200 = smul.u32 8, %s15
      %p201 = scmp.lt.s32.totalorder %s200, 15
      %s202 = scalar_select %p201, %s200, 15
      %s203 = smul.addr %s202, 8
      %s204 = scalar_lea.vmem %s4, %s203
      %s205 = smul.u32 8, %s15
      %p206 = scmp.lt.s32.totalorder %s205, 15
      %s207 = scalar_select %p206, %s205, 15
      %s208 = smul.addr %s207, 4
      %s209 = scalar_lea.vmem %s0, %s208
      %s210 = smul.u32 8, %s15
      %s211 = smul.u32 8, %s15
      %p212 = scmp.lt.s32.totalorder %s211, 15
      %s213 = scalar_select %p212, %s211, 15
      %s214 = smul.addr %s213, 8
      %s215 = scalar_lea.vmem %s1, %s214
      %s216 = smul.u32 8, %s15
      %s217 = smul.u32 8, %s15
      %p218 = scmp.lt.s32.totalorder %s217, 15
      %s219 = scalar_select %p218, %s217, 15
      %s220 = smul.addr %s219, 8
      %s221 = scalar_lea.vmem %s4, %s220
      %s222 = smul.u32 8, %s15
      %v224 = vld [vmem:[%s3] sm:$0x1]
      %v225 = vld [vmem:[%s3 + $0x1] sm:$0x1]
      %v226 = vld [vmem:[%s3 + $0x2] sm:$0x1]
      %v227 = vld [vmem:[%s209] sm:$0xf]
      %v228 = vld [vmem:[%s209 + $0x4] sm:$0xf]
      %v229 = vld [vmem:[%s209 + $0x8] sm:$0xf]
      %v230 = vld [vmem:[%s209 + $0xc] sm:$0xf]
      %v231 = vld [vmem:[%s209 + $0x10] sm:$0xf]
      %v232 = vld [vmem:[%s209 + $0x14] sm:$0xf]
      %v233 = vld [vmem:[%s209 + $0x18] sm:$0xf]
      %v234 = vld [vmem:[%s209 + $0x1c] sm:$0xf]
      %v235 = vld [vmem:[%s2] sm:$0xf]
      %v236 = vld [vmem:[%s2 + $0x4] sm:$0xf]
      %v237 = vld [vmem:[%s2 + $0x8] sm:$0xf]
      %v238 = vld [vmem:[%s2 + $0xc] sm:$0xf]
      %v239 = vld [vmem:[%s2 + $0x10] sm:$0x3]
      %v248 = vunpack.c.l.b16 %v227
      %v249 = vunpack.c.l.b16 %v228
      %v250 = vunpack.c.l.b16 %v229
      %v251 = vunpack.c.l.b16 %v230
      %v252 = vunpack.c.l.b16 %v231
      %v253 = vunpack.c.l.b16 %v232
      %v254 = vunpack.c.l.b16 %v233
      %v255 = vunpack.c.l.b16 %v234
      %v256 = vpack.c.b16 %v249, %v248
      %v257 = vpack.c.b16 %v251, %v250
      %v258 = vpack.c.b16 %v253, %v252
      %v259 = vpack.c.b16 %v255, %v254
      %v265 = vunpack.c.l.b16 %v235
      %v266 = vunpack.c.l.b16 %v236
      %v267 = vunpack.c.l.b16 %v237
      %v268 = vunpack.c.l.b16 %v238
      %v269 = vunpack.c.l.b16 %v239
      %v270 = vpack.c.b16 %v266, %v265
      %v271 = vpack.c.b16 %v268, %v267
      %v272 = vpack.c.b16 %v269, %v269
      %vm275 = vcmask 293888
      %v277 = vsel %vm275, %v256, 0
      %v280 = vsel %vm275, %v257, 0
      %v283 = vsel %vm275, %v258, 0
      %v286 = vsel %vm275, %v259, 0
      %vm288 = vcmask 1041408
      %v290 = vsel %vm288, %v272, 0
      %292 = vmatprep.subr.bf16.mxu0 0
      %293 = vmatpush1.bf16.msra.mxu0 %v270
      %294 = vmatprep.subr.bf16.mxu0 0
      %295 = vmatpush1.bf16.msra.mxu0 %v271
      %296 = vmatprep.subr.bf16.mxu0 0
      %297 = vmatpush1.bf16.msra.mxu0 %v290
      %298 = vmatprep.subr.bf16.mxu0 0
      %299 = vmatpush1.bf16.msra.mxu0 0
      %300 = vmatprep.subr.bf16.mxu0 0
      %301 = vmatpush1.bf16.msra.mxu0 0
      %302 = vmatprep.subr.bf16.mxu0 0
      %303 = vmatpush1.bf16.msra.mxu0 0
      %304 = vmatprep.subr.bf16.mxu0 0
      %305 = vmatpush1.bf16.msra.mxu0 0
      %306 = vmatprep.subr.bf16.mxu0 0
      %307 = vmatpush1.bf16.msra.mxu0 0
      %308 = vmatprep.subr.bf16.mxu0 0
      %309 = vmatpush1.bf16.msra.mxu0 0
      %310 = vmatprep.subr.bf16.mxu0 0
      %311 = vmatpush1.bf16.msra.mxu0 0
      %312 = vmatprep.subr.bf16.mxu0 0
      %313 = vmatpush1.bf16.msra.mxu0 0
      %314 = vmatprep.subr.bf16.mxu0 0
      %315 = vmatpush1.bf16.msra.mxu0 0
      %316 = vmatprep.subr.bf16.mxu0 0
      %317 = vmatpush1.bf16.msra.mxu0 0
      %318 = vmatprep.subr.bf16.mxu0 0
      %319 = vmatpush1.bf16.msra.mxu0 0
      %320 = vmatprep.subr.bf16.mxu0 0
      %321 = vmatpush1.bf16.msra.mxu0 0
      %322 = vmatprep.subr.bf16.mxu0 0
      %323 = vmatpush1.bf16.msra.mxu0 0
      %324 = vmatprep.mubr.bf16.mxu0 0
      %325 = vmatmul.mubr.bf16.gmra.mrb[0].mxu0 %v277
      %v326 = vpop.f32.mrb[0].mxu0
      %v327 = vadd.f32 0.0, %v326
      %v328 = vpop.f32.mrb[0].mxu0
      %v329 = vpop.f32.mrb[0].mxu0
      %v330 = vadd.f32 0.0, %v329
      %v331 = vpop.f32.mrb[0].mxu0
      %332 = vmatprep.mubr.bf16.mxu0 0
      %333 = vmatmul.mubr.bf16.gmra.mrb[0].mxu0 %v280
      %v334 = vpop.f32.mrb[0].mxu0
      %v335 = vadd.f32 0.0, %v334
      %v336 = vpop.f32.mrb[0].mxu0
      %v337 = vpop.f32.mrb[0].mxu0
      %v338 = vadd.f32 0.0, %v337
      %v339 = vpop.f32.mrb[0].mxu0
      %340 = vmatprep.mubr.bf16.mxu0 0
      %341 = vmatmul.mubr.bf16.gmra.mrb[0].mxu0 %v283
      %v342 = vpop.f32.mrb[0].mxu0
      %v343 = vadd.f32 0.0, %v342
      %v344 = vpop.f32.mrb[0].mxu0
      %v345 = vpop.f32.mrb[0].mxu0
      %v346 = vadd.f32 0.0, %v345
      %v347 = vpop.f32.mrb[0].mxu0
      %348 = vmatprep.mubr.bf16.mxu0 0
      %349 = vmatmul.mubr.bf16.gmra.mrb[0].mxu0 %v286
      %v350 = vpop.f32.mrb[0].mxu0
      %v351 = vadd.f32 0.0, %v350
      %v352 = vpop.f32.mrb[0].mxu0
      %v353 = vpop.f32.mrb[0].mxu0
      %v354 = vadd.f32 0.0, %v353
      %v355 = vpop.f32.mrb[0].mxu0
      %356 = vdwg.mxu0
      %v357 = vld [vmem:[%s215] sm:$0xff]
      %v358 = vld [vmem:[%s215 + $0x8] sm:$0xff]
      %v359 = vld [vmem:[%s215 + $0x10] sm:$0xff]
      %v360 = vld [vmem:[%s215 + $0x18] sm:$0xff]
      %v361 = vld [vmem:[%s215 + $0x20] sm:$0xff]
      %v362 = vld [vmem:[%s215 + $0x28] sm:$0xff]
      %v363 = vld [vmem:[%s215 + $0x30] sm:$0xff]
      %v364 = vld [vmem:[%s215 + $0x38] sm:$0xff]
      %v365 = vmax.f32 %v357, 0.0
      %v366 = vmax.f32 %v358, 0.0
      %v367 = vmax.f32 %v359, 0.0
      %v368 = vmax.f32 %v360, 0.0
      %v369 = vmax.f32 %v361, 0.0
      %v370 = vmax.f32 %v362, 0.0
      %v371 = vmax.f32 %v363, 0.0
      %v372 = vmax.f32 %v364, 0.0
      %v373 = vmin.f32 %v365, 1.0
      %v374 = vmin.f32 %v366, 1.0
      %v375 = vmin.f32 %v367, 1.0
      %v376 = vmin.f32 %v368, 1.0
      %v377 = vmin.f32 %v369, 1.0
      %v378 = vmin.f32 %v370, 1.0
      %v379 = vmin.f32 %v371, 1.0
      %v380 = vmin.f32 %v372, 1.0
      %v381 = vadd.f32 %v357, 1e-08
      %v382 = vadd.f32 %v358, 1e-08
      %v383 = vadd.f32 %v359, 1e-08
      %v384 = vadd.f32 %v360, 1e-08
      %v385 = vadd.f32 %v361, 1e-08
      %v386 = vadd.f32 %v362, 1e-08
      %v387 = vadd.f32 %v363, 1e-08
      %v388 = vadd.f32 %v364, 1e-08
      %v389 = vrcp.pop %v381
      %v390 = vrcp.pop %v382
      %v391 = vrcp.pop %v383
      %v392 = vrcp.pop %v384
      %v393 = vrcp.pop %v385
      %v394 = vrcp.pop %v386
      %v395 = vrcp.pop %v387
      %v396 = vrcp.pop %v388
      %v397 = vmul.f32 %v389, 36.0
      %v398 = vmul.f32 %v390, 36.0
      %v399 = vmul.f32 %v391, 36.0
      %v400 = vmul.f32 %v392, 36.0
      %v401 = vmul.f32 %v393, 36.0
      %v402 = vmul.f32 %v394, 36.0
      %v403 = vmul.f32 %v395, 36.0
      %v404 = vmul.f32 %v396, 36.0
      %v405 = vmul.f32 %v397, %v373
      %v406 = vmul.f32 %v398, %v374
      %v407 = vmul.f32 %v399, %v375
      %v408 = vmul.f32 %v400, %v376
      %v409 = vmul.f32 %v401, %v377
      %v410 = vmul.f32 %v402, %v378
      %v411 = vmul.f32 %v403, %v379
      %v412 = vmul.f32 %v404, %v380
      %414 = vset.pattern.permute.xlu0 0
      %415 = vperm.xlu0 %414, %v405
      %v416 = vpop.permute.xlu0 %415
      %419 = vset.pattern.permute.xlu0 0
      %420 = vperm.xlu0 %419, %v406
      %v421 = vpop.permute.xlu0 %420
      %424 = vset.pattern.permute.xlu0 0
      %425 = vperm.xlu0 %424, %v407
      %v426 = vpop.permute.xlu0 %425
      %429 = vset.pattern.permute.xlu0 0
      %430 = vperm.xlu0 %429, %v408
      %v431 = vpop.permute.xlu0 %430
      %434 = vset.pattern.permute.xlu0 0
      %435 = vperm.xlu0 %434, %v409
      %v436 = vpop.permute.xlu0 %435
      %439 = vset.pattern.permute.xlu0 0
      %440 = vperm.xlu0 %439, %v410
      %v441 = vpop.permute.xlu0 %440
      %444 = vset.pattern.permute.xlu0 0
      %445 = vperm.xlu0 %444, %v411
      %v446 = vpop.permute.xlu0 %445
      %449 = vset.pattern.permute.xlu0 0
      %450 = vperm.xlu0 %449, %v412
      %v451 = vpop.permute.xlu0 %450
      %v453 = vmul.f32 %v327, %v416
      %v454 = vmul.f32 %v330, %v421
      %v455 = vmul.f32 %v335, %v426
      %v456 = vmul.f32 %v338, %v431
      %v457 = vmul.f32 %v343, %v436
      %v458 = vmul.f32 %v346, %v441
      %v459 = vmul.f32 %v351, %v446
      %v460 = vmul.f32 %v354, %v451
      %v461 = vlaneseq
      %v462 = vshrl.u32 %v461, 7
      %v463 = vsub.s32 0, %v462
      %v464 = vrot.slane %v224, %v463
      %v465 = vadd.f32 %v453, %v464
      %v466 = vadd.f32 %v454, %v464
      %v467 = vadd.f32 %v455, %v464
      %v468 = vadd.f32 %v456, %v464
      %v469 = vadd.f32 %v457, %v464
      %v470 = vadd.f32 %v458, %v464
      %v471 = vadd.f32 %v459, %v464
      %v472 = vadd.f32 %v460, %v464
      %474 = vset.pattern.permute.xlu0 0
      %475 = vperm.xlu0 %474, %v373
      %v476 = vpop.permute.xlu0 %475
      %479 = vset.pattern.permute.xlu0 0
      %480 = vperm.xlu0 %479, %v374
      %v481 = vpop.permute.xlu0 %480
      %484 = vset.pattern.permute.xlu0 0
      %485 = vperm.xlu0 %484, %v375
      %v486 = vpop.permute.xlu0 %485
      %489 = vset.pattern.permute.xlu0 0
      %490 = vperm.xlu0 %489, %v376
      %v491 = vpop.permute.xlu0 %490
      %494 = vset.pattern.permute.xlu0 0
      %495 = vperm.xlu0 %494, %v377
      %v496 = vpop.permute.xlu0 %495
      %499 = vset.pattern.permute.xlu0 0
      %500 = vperm.xlu0 %499, %v378
      %v501 = vpop.permute.xlu0 %500
      %504 = vset.pattern.permute.xlu0 0
      %505 = vperm.xlu0 %504, %v379
      %v506 = vpop.permute.xlu0 %505
      %509 = vset.pattern.permute.xlu0 0
      %510 = vperm.xlu0 %509, %v380
      %v511 = vpop.permute.xlu0 %510
      %v513 = vmul.f32 %v465, %v476
      %v514 = vmul.f32 %v466, %v481
      %v515 = vmul.f32 %v467, %v486
      %v516 = vmul.f32 %v468, %v491
      %v517 = vmul.f32 %v469, %v496
      %v518 = vmul.f32 %v470, %v501
      %v519 = vmul.f32 %v471, %v506
      %v520 = vmul.f32 %v472, %v511
      %v521 = vlaneseq
      %v522 = vshrl.u32 %v521, 7
      %v523 = vsub.s32 0, %v522
      %v524 = vrot.slane %v225, %v523
      %v525 = vmul.f32 %v513, %v524
      %v526 = vmul.f32 %v514, %v524
      %v527 = vmul.f32 %v515, %v524
      %v528 = vmul.f32 %v516, %v524
      %v529 = vmul.f32 %v517, %v524
      %v530 = vmul.f32 %v518, %v524
      %v531 = vmul.f32 %v519, %v524
      %v532 = vmul.f32 %v520, %v524
      %v533 = vlaneseq
      %v534 = vshrl.u32 %v533, 7
      %v535 = vsub.s32 0, %v534
      %v536 = vrot.slane %v226, %v535
      %v537 = vadd.f32 %v525, %v536
      %v538 = vadd.f32 %v526, %v536
      %v539 = vadd.f32 %v527, %v536
      %v540 = vadd.f32 %v528, %v536
      %v541 = vadd.f32 %v529, %v536
      %v542 = vadd.f32 %v530, %v536
      %v543 = vadd.f32 %v531, %v536
      %v544 = vadd.f32 %v532, %v536
      %v545 = vmax.f32 %v537, 0.0
      %v546 = vmax.f32 %v538, 0.0
      %v547 = vmax.f32 %v539, 0.0
      %v548 = vmax.f32 %v540, 0.0
      %v549 = vmax.f32 %v541, 0.0
      %v550 = vmax.f32 %v542, 0.0
      %v551 = vmax.f32 %v543, 0.0
      %v552 = vmax.f32 %v544, 0.0
      %553 = vst [vmem:[%s221] sm:$0xff] %v545
      %554 = vst [vmem:[%s221 + $0x8] sm:$0xff] %v546
      %555 = vst [vmem:[%s221 + $0x10] sm:$0xff] %v547
      %556 = vst [vmem:[%s221 + $0x18] sm:$0xff] %v548
      %557 = vst [vmem:[%s221 + $0x20] sm:$0xff] %v549
      %558 = vst [vmem:[%s221 + $0x28] sm:$0xff] %v550
      %559 = vst [vmem:[%s221 + $0x30] sm:$0xff] %v551
      %560 = vst [vmem:[%s221 + $0x38] sm:$0xff] %v552
      %s561 = smul.u32 8, %s15
      %p562 = scmp.lt.s32.totalorder %s561, 15
      %s563 = scalar_select %p562, %s561, 15
      %s564 = smul.addr %s563, 8
      %s565 = scalar_lea.vmem %s4, %s564
      // Predicated region
      $region37: #{pconv_encoder_forward.3} parent=35 // pred_check
        %p566 = pneg %p127
      $region38: #{pconv_encoder_forward.3} parent=35 // pred_check_branch
        %568 = sbr.rel (%p566) target = $region40
      $region39: #{pconv_encoder_forward.3} parent=35 // pred_region
        %s569 = smul.u32 8, %s15
      $region40: #{pconv_encoder_forward.3} parent=35 // pred_fallthru
        _
    $region36: #{pconv_encoder_forward.3} parent=5 // pred_fallthru
      _
    %p570 = scmp.le.s32.totalorder 2, %s10
    // Predicated region
    $region41: #{pconv_encoder_forward.3} parent=5 // pred_check
      %p571 = pneg %p570
    $region42: #{pconv_encoder_forward.3} parent=5 // pred_check_branch
      %573 = sbr.rel (%p571) target = $region44
    $region43: #{pconv_encoder_forward.3} parent=5 // pred_region
      %s574 = ssub.s32 %s10, 2
      // Predicated region
      $region45: #{pconv_encoder_forward.3} parent=43 // pred_check
        %p575 = pneg %p133
      $region46: #{pconv_encoder_forward.3} parent=43 // pred_check_branch
        %577 = sbr.rel (%p575) target = $region48
      $region47: #{pconv_encoder_forward.3} parent=43 // pred_region
        %s578 = smul.u32 8, %s16
        %p579 = scmp.lt.s32.totalorder %s578, 15
        %s580 = scalar_select %p579, %s578, 15
        %s581 = smul.addr %s580, 8
        %s582 = scalar_lea.vmem %s4, %s581
      $region48: #{pconv_encoder_forward.3} parent=43 // pred_fallthru
        _
    $region44: #{pconv_encoder_forward.3} parent=5 // pred_fallthru
      _
  $region6: #{pconv_encoder_forward.3} parent=0 // loop_footer
    %s14 = sadd.s32 1, %s10
  $region7: #{pconv_encoder_forward.3} parent=0 // loop_footer_branch
    %9 = sbr.rel target = $region3
  $region8: #{pconv_encoder_forward.3} parent=0 // loop_exit
    _

// kernel: pconv_encoder_forward.2
$region0: #{pconv_encoder_forward.2}
  #allocation0 [shape = 'u32[]', space=smem, size = 0x4, offset = 0x4, fixed_abs, tag = 'smem constant byte address 0x4 - core index']
  #allocation1 [shape = 'u32[144,128]{1,0:T(1,128)}', space=vmem, size = 0x12000, scoped, tag = 'internal scratch']
  %s0 = inlined_call_operand.vmem [shape: bf16[128,36], index: 0, kind: input, shape index: {}]
  %s1 = inlined_call_operand.vmem [shape: f32[128,1], index: 1, kind: input, shape index: {}]
  %s2 = inlined_call_operand.vmem [shape: bf16[36,128], index: 2, kind: input, shape index: {}]
  %s3 = inlined_call_operand.vmem [shape: f32[1,128], index: 3, kind: input, shape index: {}]
  %s4 = inlined_call_operand.vmem [shape: f32[16,128], index: 4, kind: output, shape index: {}]
  %s5 = sld [smem:[#allocation0]]
  $region49: #{pconv_encoder_forward.2} parent=0
    _
  %s7 = ssub.s32 1, %s5
  %s8 = scalar_select 0, %s7, %s5
  loop: start=0, step=1, limit=4
  $region2: #{pconv_encoder_forward.2} parent=0 // loop_pre_header
    _
  $region3: #{pconv_encoder_forward.2} parent=0 // loop_header
    %s10 = sphi 0, %s14
    %p11 = scmp.ge.s32.totalorder %s10, 4
    %s20 = sphi 0, %s22
    %s23 = sphi 0, %s20
    %s24 = sphi 0, %s23
    %s40 = sphi 0, %s24
    %s46 = sphi 0, %s48
    %s49 = sphi 0, %s46
    %s50 = sphi 0, %s49
    %s66 = sphi 0, %s50
    %s70 = sphi 0, %s70
    %s72 = sphi 0, %s70
    %s73 = sphi 0, %s72
    %s87 = sphi 0, %s73
    %s91 = sphi 0, %s91
    %s93 = sphi 0, %s91
    %s94 = sphi 0, %s93
    %s108 = sphi 0, %s94
    %s114 = sphi 0, %s116
    %s117 = sphi 0, %s114
    %s118 = sphi 0, %s117
    %s134 = sphi 0, %s118
  $region4: #{pconv_encoder_forward.2} parent=0 // loop_header_branch
    %13 = sbr.rel (%p11) target = $region8
  $region5: #{pconv_encoder_forward.2} parent=0 // loop_body
    %s15 = ssub.s32 %s10, 1
    %s16 = ssub.s32 %s10, 2
    %s17 = sadd.s32 %s10, 1
    %s18 = ssub.s32 %s10, %s17
    %p19 = scmp.eq.s32.totalorder %s18, 0
    %s21 = sadd.s32 %s20, 1
    %s22 = scalar_select %p19, %s20, %s21
    %p25 = pneg %p19
    %p26 = scmp.eq.s32.totalorder %s10, 1
    %p27 = por %p25, %p26
    %p28 = scmp.ne.s32.totalorder %s20, %s23
    %p29 = scmp.eq.s32.totalorder %s10, 0
    %p30 = por %p28, %p29
    %p31 = scmp.ne.s32.totalorder %s20, %s23
    %p32 = scmp.eq.s32.totalorder %s15, 1
    %p33 = por %p31, %p32
    %p34 = scmp.ne.s32.totalorder %s23, %s24
    %p35 = scmp.eq.s32.totalorder %s15, 0
    %p36 = por %p34, %p35
    %p37 = scmp.ne.s32.totalorder %s23, %s24
    %p38 = scmp.eq.s32.totalorder %s16, 1
    %p39 = por %p37, %p38
    %p41 = scmp.ne.s32.totalorder %s24, %s40
    %p42 = scmp.eq.s32.totalorder %s16, 0
    %p43 = por %p41, %p42
    %s44 = ssub.s32 %s10, %s17
    %p45 = scmp.eq.s32.totalorder %s44, 0
    %s47 = sadd.s32 %s46, 1
    %s48 = scalar_select %p45, %s46, %s47
    %p51 = pneg %p45
    %p52 = scmp.eq.s32.totalorder %s10, 1
    %p53 = por %p51, %p52
    %p54 = scmp.ne.s32.totalorder %s46, %s49
    %p55 = scmp.eq.s32.totalorder %s10, 0
    %p56 = por %p54, %p55
    %p57 = scmp.ne.s32.totalorder %s46, %s49
    %p58 = scmp.eq.s32.totalorder %s15, 1
    %p59 = por %p57, %p58
    %p60 = scmp.ne.s32.totalorder %s49, %s50
    %p61 = scmp.eq.s32.totalorder %s15, 0
    %p62 = por %p60, %p61
    %p63 = scmp.ne.s32.totalorder %s49, %s50
    %p64 = scmp.eq.s32.totalorder %s16, 1
    %p65 = por %p63, %p64
    %p67 = scmp.ne.s32.totalorder %s50, %s66
    %p68 = scmp.eq.s32.totalorder %s16, 0
    %p69 = por %p67, %p68
    %s71 = sadd.s32 %s70, 1
    %p74 = scmp.eq.s32.totalorder %s10, 1
    %p75 = scmp.ne.s32.totalorder %s70, %s72
    %p76 = scmp.eq.s32.totalorder %s10, 0
    %p77 = por %p75, %p76
    %p78 = scmp.ne.s32.totalorder %s70, %s72
    %p79 = scmp.eq.s32.totalorder %s15, 1
    %p80 = por %p78, %p79
    %p81 = scmp.ne.s32.totalorder %s72, %s73
    %p82 = scmp.eq.s32.totalorder %s15, 0
    %p83 = por %p81, %p82
    %p84 = scmp.ne.s32.totalorder %s72, %s73
    %p85 = scmp.eq.s32.totalorder %s16, 1
    %p86 = por %p84, %p85
    %p88 = scmp.ne.s32.totalorder %s73, %s87
    %p89 = scmp.eq.s32.totalorder %s16, 0
    %p90 = por %p88, %p89
    %s92 = sadd.s32 %s91, 1
    %p95 = scmp.eq.s32.totalorder %s10, 1
    %p96 = scmp.ne.s32.totalorder %s91, %s93
    %p97 = scmp.eq.s32.totalorder %s10, 0
    %p98 = por %p96, %p97
    %p99 = scmp.ne.s32.totalorder %s91, %s93
    %p100 = scmp.eq.s32.totalorder %s15, 1
    %p101 = por %p99, %p100
    %p102 = scmp.ne.s32.totalorder %s93, %s94
    %p103 = scmp.eq.s32.totalorder %s15, 0
    %p104 = por %p102, %p103
    %p105 = scmp.ne.s32.totalorder %s93, %s94
    %p106 = scmp.eq.s32.totalorder %s16, 1
    %p107 = por %p105, %p106
    %p109 = scmp.ne.s32.totalorder %s94, %s108
    %p110 = scmp.eq.s32.totalorder %s16, 0
    %p111 = por %p109, %p110
    %s112 = ssub.s32 %s10, %s17
    %p113 = scmp.eq.s32.totalorder %s112, 0
    %s115 = sadd.s32 %s114, 1
    %s116 = scalar_select %p113, %s114, %s115
    %p119 = pneg %p113
    %p120 = scmp.eq.s32.totalorder %s10, 1
    %p121 = por %p119, %p120
    %p122 = scmp.ne.s32.totalorder %s114, %s117
    %p123 = scmp.eq.s32.totalorder %s10, 0
    %p124 = por %p122, %p123
    %p125 = scmp.ne.s32.totalorder %s114, %s117
    %p126 = scmp.eq.s32.totalorder %s15, 1
    %p127 = por %p125, %p126
    %p128 = scmp.ne.s32.totalorder %s117, %s118
    %p129 = scmp.eq.s32.totalorder %s15, 0
    %p130 = por %p128, %p129
    %p131 = scmp.ne.s32.totalorder %s117, %s118
    %p132 = scmp.eq.s32.totalorder %s16, 1
    %p133 = por %p131, %p132
    %p135 = scmp.ne.s32.totalorder %s118, %s134
    %p136 = scmp.eq.s32.totalorder %s16, 0
    %p137 = por %p135, %p136
    %p138 = scmp.le.s32.totalorder 1, %s10
    %p139 = scmp.lt.s32.totalorder %s10, 3
    %p140 = pnand %p138, %p139
    %p141 = pneg %p140
    // Predicated region
    $region9: #{pconv_encoder_forward.2} parent=5 // pred_check
      _
    $region10: #{pconv_encoder_forward.2} parent=5 // pred_check_branch
      %143 = sbr.rel (%p140) target = $region12
    $region11: #{pconv_encoder_forward.2} parent=5 // pred_region
      %s144 = ssub.s32 %s10, 1
      // Predicated region
      $region13: #{pconv_encoder_forward.2} parent=11 // pred_check
        %p145 = pneg %p83
      $region14: #{pconv_encoder_forward.2} parent=11 // pred_check_branch
        %147 = sbr.rel (%p145) target = $region16
      $region15: #{pconv_encoder_forward.2} parent=11 // pred_region
        _
      $region16: #{pconv_encoder_forward.2} parent=11 // pred_fallthru
        _
      // Predicated region
      $region17: #{pconv_encoder_forward.2} parent=11 // pred_check
        %p148 = pneg %p104
      $region18: #{pconv_encoder_forward.2} parent=11 // pred_check_branch
        %150 = sbr.rel (%p148) target = $region20
      $region19: #{pconv_encoder_forward.2} parent=11 // pred_region
        _
      $region20: #{pconv_encoder_forward.2} parent=11 // pred_fallthru
        _
    $region12: #{pconv_encoder_forward.2} parent=5 // pred_fallthru
      _
    %p151 = scmp.lt.s32.totalorder %s10, 2
    // Predicated region
    $region21: #{pconv_encoder_forward.2} parent=5 // pred_check
      %p152 = pneg %p151
    $region22: #{pconv_encoder_forward.2} parent=5 // pred_check_branch
      %154 = sbr.rel (%p152) target = $region24
    $region23: #{pconv_encoder_forward.2} parent=5 // pred_region
      // Predicated region
      $region25: #{pconv_encoder_forward.2} parent=23 // pred_check
        %p155 = pneg %p30
      $region26: #{pconv_encoder_forward.2} parent=23 // pred_check_branch
        %157 = sbr.rel (%p155) target = $region28
      $region27: #{pconv_encoder_forward.2} parent=23 // pred_region
        %s158 = smul.u32 8, %s10
        %p159 = scmp.lt.s32.totalorder %s158, 15
        %s160 = scalar_select %p159, %s158, 15
        %s161 = smul.addr %s160, 4
        %s162 = scalar_lea.vmem %s0, %s161
        %s163 = smul.u32 8, %s10
      $region28: #{pconv_encoder_forward.2} parent=23 // pred_fallthru
        _
      // Predicated region
      $region29: #{pconv_encoder_forward.2} parent=23 // pred_check
        %p164 = pneg %p56
      $region30: #{pconv_encoder_forward.2} parent=23 // pred_check_branch
        %166 = sbr.rel (%p164) target = $region32
      $region31: #{pconv_encoder_forward.2} parent=23 // pred_region
        %s167 = smul.u32 8, %s10
        %p168 = scmp.lt.s32.totalorder %s167, 15
        %s169 = scalar_select %p168, %s167, 15
        %s170 = smul.addr %s169, 8
        %s171 = scalar_lea.vmem %s1, %s170
        %s172 = smul.u32 8, %s10
      $region32: #{pconv_encoder_forward.2} parent=23 // pred_fallthru
        _
    $region24: #{pconv_encoder_forward.2} parent=5 // pred_fallthru
      _
    %p173 = scmp.le.s32.totalorder 1, %s10
    %p174 = scmp.lt.s32.totalorder %s10, 3
    %p175 = pnand %p173, %p174
    %p176 = pneg %p175
    // Predicated region
    $region33: #{pconv_encoder_forward.2} parent=5 // pred_check
      _
    $region34: #{pconv_encoder_forward.2} parent=5 // pred_check_branch
      %178 = sbr.rel (%p175) target = $region36
    $region35: #{pconv_encoder_forward.2} parent=5 // pred_region
      %s179 = ssub.s32 %s10, 1
      %s180 = smul.u32 8, %s15
      %p181 = scmp.lt.s32.totalorder %s180, 15
      %s182 = scalar_select %p181, %s180, 15
      %s183 = smul.addr %s182, 4
      %s184 = scalar_lea.vmem %s0, %s183
      %p185 = pneg %p36
      %p186 = pneg %p33
      %s187 = smul.u32 8, %s15
      %p188 = scmp.lt.s32.totalorder %s187, 15
      %s189 = scalar_select %p188, %s187, 15
      %s190 = smul.addr %s189, 8
      %s191 = scalar_lea.vmem %s1, %s190
      %p192 = pneg %p62
      %p193 = pneg %p59
      %p194 = pneg %p83
      %p195 = pneg %p80
      %p196 = pneg %p104
      %p197 = pneg %p101
      %p198 = pneg %p130
      %p199 = pneg %p127
      %p200 = scmp.lt.s32.totalorder %s15, 1
      %s201 = scalar_select %p200, %s15, 1
      %s202 = smul.addr %s201, 8
      %s203 = scalar_lea.vmem %s4, %s202
      %s204 = smul.u32 8, %s15
      %p205 = scmp.lt.s32.totalorder %s204, 15
      %s206 = scalar_select %p205, %s204, 15
      %s207 = smul.addr %s206, 4
      %s208 = scalar_lea.vmem %s0, %s207
      %s209 = smul.u32 8, %s15
      %s210 = smul.u32 8, %s15
      %p211 = scmp.lt.s32.totalorder %s210, 15
      %s212 = scalar_select %p211, %s210, 15
      %s213 = smul.addr %s212, 8
      %s214 = scalar_lea.vmem %s1, %s213
      %s215 = smul.u32 8, %s15
      %p216 = scmp.lt.s32.totalorder %s15, 1
      %s217 = scalar_select %p216, %s15, 1
      %s218 = smul.addr %s217, 8
      %s219 = scalar_lea.vmem %s4, %s218
      %v221 = vld [vmem:[%s3] sm:$0x1]
      %v222 = vld [vmem:[%s208] sm:$0xf]
      %v223 = vld [vmem:[%s208 + $0x4] sm:$0xf]
      %v224 = vld [vmem:[%s208 + $0x8] sm:$0xf]
      %v225 = vld [vmem:[%s208 + $0xc] sm:$0xf]
      %v226 = vld [vmem:[%s208 + $0x10] sm:$0xf]
      %v227 = vld [vmem:[%s208 + $0x14] sm:$0xf]
      %v228 = vld [vmem:[%s208 + $0x18] sm:$0xf]
      %v229 = vld [vmem:[%s208 + $0x1c] sm:$0xf]
      %v230 = vld [vmem:[%s2] sm:$0xf]
      %v231 = vld [vmem:[%s2 + $0x4] sm:$0xf]
      %v232 = vld [vmem:[%s2 + $0x8] sm:$0xf]
      %v233 = vld [vmem:[%s2 + $0xc] sm:$0xf]
      %v234 = vld [vmem:[%s2 + $0x10] sm:$0x3]
      %v243 = vunpack.c.l.b16 %v222
      %v244 = vunpack.c.l.b16 %v223
      %v245 = vunpack.c.l.b16 %v224
      %v246 = vunpack.c.l.b16 %v225
      %v247 = vunpack.c.l.b16 %v226
      %v248 = vunpack.c.l.b16 %v227
      %v249 = vunpack.c.l.b16 %v228
      %v250 = vunpack.c.l.b16 %v229
      %v251 = vpack.c.b16 %v244, %v243
      %v252 = vpack.c.b16 %v246, %v245
      %v253 = vpack.c.b16 %v248, %v247
      %v254 = vpack.c.b16 %v250, %v249
      %v260 = vunpack.c.l.b16 %v230
      %v261 = vunpack.c.l.b16 %v231
      %v262 = vunpack.c.l.b16 %v232
      %v263 = vunpack.c.l.b16 %v233
      %v264 = vunpack.c.l.b16 %v234
      %v265 = vpack.c.b16 %v261, %v260
      %v266 = vpack.c.b16 %v263, %v262
      %v267 = vpack.c.b16 %v264, %v264
      %vm270 = vcmask 293888
      %v272 = vsel %vm270, %v251, 0
      %v275 = vsel %vm270, %v252, 0
      %v278 = vsel %vm270, %v253, 0
      %v281 = vsel %vm270, %v254, 0
      %vm283 = vcmask 1041408
      %v285 = vsel %vm283, %v267, 0
      %287 = vmatprep.subr.bf16.mxu0 0
      %288 = vmatpush1.bf16.msra.mxu0 %v265
      %289 = vmatprep.subr.bf16.mxu0 0
      %290 = vmatpush1.bf16.msra.mxu0 %v266
      %291 = vmatprep.subr.bf16.mxu0 0
      %292 = vmatpush1.bf16.msra.mxu0 %v285
      %293 = vmatprep.subr.bf16.mxu0 0
      %294 = vmatpush1.bf16.msra.mxu0 0
      %295 = vmatprep.subr.bf16.mxu0 0
      %296 = vmatpush1.bf16.msra.mxu0 0
      %297 = vmatprep.subr.bf16.mxu0 0
      %298 = vmatpush1.bf16.msra.mxu0 0
      %299 = vmatprep.subr.bf16.mxu0 0
      %300 = vmatpush1.bf16.msra.mxu0 0
      %301 = vmatprep.subr.bf16.mxu0 0
      %302 = vmatpush1.bf16.msra.mxu0 0
      %303 = vmatprep.subr.bf16.mxu0 0
      %304 = vmatpush1.bf16.msra.mxu0 0
      %305 = vmatprep.subr.bf16.mxu0 0
      %306 = vmatpush1.bf16.msra.mxu0 0
      %307 = vmatprep.subr.bf16.mxu0 0
      %308 = vmatpush1.bf16.msra.mxu0 0
      %309 = vmatprep.subr.bf16.mxu0 0
      %310 = vmatpush1.bf16.msra.mxu0 0
      %311 = vmatprep.subr.bf16.mxu0 0
      %312 = vmatpush1.bf16.msra.mxu0 0
      %313 = vmatprep.subr.bf16.mxu0 0
      %314 = vmatpush1.bf16.msra.mxu0 0
      %315 = vmatprep.subr.bf16.mxu0 0
      %316 = vmatpush1.bf16.msra.mxu0 0
      %317 = vmatprep.subr.bf16.mxu0 0
      %318 = vmatpush1.bf16.msra.mxu0 0
      %319 = vmatprep.mubr.bf16.mxu0 0
      %320 = vmatmul.mubr.bf16.gmra.mrb[0].mxu0 %v272
      %v321 = vpop.f32.mrb[0].mxu0
      %v322 = vadd.f32 0.0, %v321
      %v323 = vpop.f32.mrb[0].mxu0
      %v324 = vpop.f32.mrb[0].mxu0
      %v325 = vadd.f32 0.0, %v324
      %v326 = vpop.f32.mrb[0].mxu0
      %327 = vmatprep.mubr.bf16.mxu0 0
      %328 = vmatmul.mubr.bf16.gmra.mrb[0].mxu0 %v275
      %v329 = vpop.f32.mrb[0].mxu0
      %v330 = vadd.f32 0.0, %v329
      %v331 = vpop.f32.mrb[0].mxu0
      %v332 = vpop.f32.mrb[0].mxu0
      %v333 = vadd.f32 0.0, %v332
      %v334 = vpop.f32.mrb[0].mxu0
      %335 = vmatprep.mubr.bf16.mxu0 0
      %336 = vmatmul.mubr.bf16.gmra.mrb[0].mxu0 %v278
      %v337 = vpop.f32.mrb[0].mxu0
      %v338 = vadd.f32 0.0, %v337
      %v339 = vpop.f32.mrb[0].mxu0
      %v340 = vpop.f32.mrb[0].mxu0
      %v341 = vadd.f32 0.0, %v340
      %v342 = vpop.f32.mrb[0].mxu0
      %343 = vmatprep.mubr.bf16.mxu0 0
      %344 = vmatmul.mubr.bf16.gmra.mrb[0].mxu0 %v281
      %v345 = vpop.f32.mrb[0].mxu0
      %v346 = vadd.f32 0.0, %v345
      %v347 = vpop.f32.mrb[0].mxu0
      %v348 = vpop.f32.mrb[0].mxu0
      %v349 = vadd.f32 0.0, %v348
      %v350 = vpop.f32.mrb[0].mxu0
      %351 = vdwg.mxu0
      %v352 = vld [vmem:[%s214] sm:$0xff]
      %v353 = vld [vmem:[%s214 + $0x8] sm:$0xff]
      %v354 = vld [vmem:[%s214 + $0x10] sm:$0xff]
      %v355 = vld [vmem:[%s214 + $0x18] sm:$0xff]
      %v356 = vld [vmem:[%s214 + $0x20] sm:$0xff]
      %v357 = vld [vmem:[%s214 + $0x28] sm:$0xff]
      %v358 = vld [vmem:[%s214 + $0x30] sm:$0xff]
      %v359 = vld [vmem:[%s214 + $0x38] sm:$0xff]
      %v360 = vmax.f32 %v352, 0.0
      %v361 = vmax.f32 %v353, 0.0
      %v362 = vmax.f32 %v354, 0.0
      %v363 = vmax.f32 %v355, 0.0
      %v364 = vmax.f32 %v356, 0.0
      %v365 = vmax.f32 %v357, 0.0
      %v366 = vmax.f32 %v358, 0.0
      %v367 = vmax.f32 %v359, 0.0
      %v368 = vmin.f32 %v360, 1.0
      %v369 = vmin.f32 %v361, 1.0
      %v370 = vmin.f32 %v362, 1.0
      %v371 = vmin.f32 %v363, 1.0
      %v372 = vmin.f32 %v364, 1.0
      %v373 = vmin.f32 %v365, 1.0
      %v374 = vmin.f32 %v366, 1.0
      %v375 = vmin.f32 %v367, 1.0
      %v376 = vadd.f32 %v352, 1e-08
      %v377 = vadd.f32 %v353, 1e-08
      %v378 = vadd.f32 %v354, 1e-08
      %v379 = vadd.f32 %v355, 1e-08
      %v380 = vadd.f32 %v356, 1e-08
      %v381 = vadd.f32 %v357, 1e-08
      %v382 = vadd.f32 %v358, 1e-08
      %v383 = vadd.f32 %v359, 1e-08
      %v384 = vrcp.pop %v376
      %v385 = vrcp.pop %v377
      %v386 = vrcp.pop %v378
      %v387 = vrcp.pop %v379
      %v388 = vrcp.pop %v380
      %v389 = vrcp.pop %v381
      %v390 = vrcp.pop %v382
      %v391 = vrcp.pop %v383
      %v392 = vmul.f32 %v384, 36.0
      %v393 = vmul.f32 %v385, 36.0
      %v394 = vmul.f32 %v386, 36.0
      %v395 = vmul.f32 %v387, 36.0
      %v396 = vmul.f32 %v388, 36.0
      %v397 = vmul.f32 %v389, 36.0
      %v398 = vmul.f32 %v390, 36.0
      %v399 = vmul.f32 %v391, 36.0
      %v400 = vmul.f32 %v392, %v368
      %v401 = vmul.f32 %v393, %v369
      %v402 = vmul.f32 %v394, %v370
      %v403 = vmul.f32 %v395, %v371
      %v404 = vmul.f32 %v396, %v372
      %v405 = vmul.f32 %v397, %v373
      %v406 = vmul.f32 %v398, %v374
      %v407 = vmul.f32 %v399, %v375
      %409 = vset.pattern.permute.xlu0 0
      %410 = vperm.xlu0 %409, %v400
      %v411 = vpop.permute.xlu0 %410
      %414 = vset.pattern.permute.xlu0 0
      %415 = vperm.xlu0 %414, %v401
      %v416 = vpop.permute.xlu0 %415
      %419 = vset.pattern.permute.xlu0 0
      %420 = vperm.xlu0 %419, %v402
      %v421 = vpop.permute.xlu0 %420
      %424 = vset.pattern.permute.xlu0 0
      %425 = vperm.xlu0 %424, %v403
      %v426 = vpop.permute.xlu0 %425
      %429 = vset.pattern.permute.xlu0 0
      %430 = vperm.xlu0 %429, %v404
      %v431 = vpop.permute.xlu0 %430
      %434 = vset.pattern.permute.xlu0 0
      %435 = vperm.xlu0 %434, %v405
      %v436 = vpop.permute.xlu0 %435
      %439 = vset.pattern.permute.xlu0 0
      %440 = vperm.xlu0 %439, %v406
      %v441 = vpop.permute.xlu0 %440
      %444 = vset.pattern.permute.xlu0 0
      %445 = vperm.xlu0 %444, %v407
      %v446 = vpop.permute.xlu0 %445
      %v448 = vmul.f32 %v322, %v411
      %v449 = vmul.f32 %v325, %v416
      %v450 = vmul.f32 %v330, %v421
      %v451 = vmul.f32 %v333, %v426
      %v452 = vmul.f32 %v338, %v431
      %v453 = vmul.f32 %v341, %v436
      %v454 = vmul.f32 %v346, %v441
      %v455 = vmul.f32 %v349, %v446
      %v457 = vlaneseq
      %v458 = vshrl.u32 %v457, 7
      %v459 = vsub.s32 0, %v458
      %v460 = vrot.slane %v221, %v459
      %v462 = vadd.f32 %v448, %v460
      %v463 = vadd.f32 %v449, %v460
      %v464 = vadd.f32 %v450, %v460
      %v465 = vadd.f32 %v451, %v460
      %v466 = vadd.f32 %v452, %v460
      %v467 = vadd.f32 %v453, %v460
      %v468 = vadd.f32 %v454, %v460
      %v469 = vadd.f32 %v455, %v460
      %471 = vset.pattern.permute.xlu0 0
      %472 = vperm.xlu0 %471, %v368
      %v473 = vpop.permute.xlu0 %472
      %476 = vset.pattern.permute.xlu0 0
      %477 = vperm.xlu0 %476, %v369
      %v478 = vpop.permute.xlu0 %477
      %481 = vset.pattern.permute.xlu0 0
      %482 = vperm.xlu0 %481, %v370
      %v483 = vpop.permute.xlu0 %482
      %486 = vset.pattern.permute.xlu0 0
      %487 = vperm.xlu0 %486, %v371
      %v488 = vpop.permute.xlu0 %487
      %491 = vset.pattern.permute.xlu0 0
      %492 = vperm.xlu0 %491, %v372
      %v493 = vpop.permute.xlu0 %492
      %496 = vset.pattern.permute.xlu0 0
      %497 = vperm.xlu0 %496, %v373
      %v498 = vpop.permute.xlu0 %497
      %501 = vset.pattern.permute.xlu0 0
      %502 = vperm.xlu0 %501, %v374
      %v503 = vpop.permute.xlu0 %502
      %506 = vset.pattern.permute.xlu0 0
      %507 = vperm.xlu0 %506, %v375
      %v508 = vpop.permute.xlu0 %507
      %v510 = vmul.f32 %v462, %v473
      %v511 = vmul.f32 %v463, %v478
      %v512 = vmul.f32 %v464, %v483
      %v513 = vmul.f32 %v465, %v488
      %v514 = vmul.f32 %v466, %v493
      %v515 = vmul.f32 %v467, %v498
      %v516 = vmul.f32 %v468, %v503
      %v517 = vmul.f32 %v469, %v508
      %v518 = vadd.f32 %v510, %v511
      %v519 = vadd.f32 %v518, %v512
      %v520 = vadd.f32 %v519, %v513
      %v521 = vadd.f32 %v520, %v514
      %v522 = vadd.f32 %v521, %v515
      %v523 = vadd.f32 %v522, %v516
      %v524 = vadd.f32 %v523, %v517
      %v525 = vrot.slane %v524, 4
      %v526 = vadd.f32 %v524, %v525
      %v527 = vrot.slane %v526, 2
      %v528 = vadd.f32 %v526, %v527
      %v529 = vrot.slane %v528, 1
      %v530 = vadd.f32 %v528, %v529
      %531 = vst [vmem:[%s219] sm:$0x1] %v530
      %v532 = vmul.f32 %v510, %v510
      %v533 = vmul.f32 %v511, %v511
      %v534 = vmul.f32 %v512, %v512
      %v535 = vmul.f32 %v513, %v513
      %v536 = vmul.f32 %v514, %v514
      %v537 = vmul.f32 %v515, %v515
      %v538 = vmul.f32 %v516, %v516
      %v539 = vmul.f32 %v517, %v517
      %v540 = vadd.f32 %v532, %v533
      %v541 = vadd.f32 %v540, %v534
      %v542 = vadd.f32 %v541, %v535
      %v543 = vadd.f32 %v542, %v536
      %v544 = vadd.f32 %v543, %v537
      %v545 = vadd.f32 %v544, %v538
      %v546 = vadd.f32 %v545, %v539
      %v547 = vrot.slane %v546, 4
      %v548 = vadd.f32 %v546, %v547
      %v549 = vrot.slane %v548, 2
      %v550 = vadd.f32 %v548, %v549
      %v551 = vrot.slane %v550, 1
      %v552 = vadd.f32 %v550, %v551
      %553 = vst [vmem:[%s219 + $0x1] sm:$0x1] %v552
      %p554 = scmp.lt.s32.totalorder %s15, 1
      %s555 = scalar_select %p554, %s15, 1
      %s556 = smul.addr %s555, 8
      %s557 = scalar_lea.vmem %s4, %s556
      // Predicated region
      $region37: #{pconv_encoder_forward.2} parent=35 // pred_check
        %p558 = pneg %p127
      $region38: #{pconv_encoder_forward.2} parent=35 // pred_check_branch
        %560 = sbr.rel (%p558) target = $region40
      $region39: #{pconv_encoder_forward.2} parent=35 // pred_region
        _
      $region40: #{pconv_encoder_forward.2} parent=35 // pred_fallthru
        _
    $region36: #{pconv_encoder_forward.2} parent=5 // pred_fallthru
      _
    %p561 = scmp.le.s32.totalorder 2, %s10
    // Predicated region
    $region41: #{pconv_encoder_forward.2} parent=5 // pred_check
      %p562 = pneg %p561
    $region42: #{pconv_encoder_forward.2} parent=5 // pred_check_branch
      %564 = sbr.rel (%p562) target = $region44
    $region43: #{pconv_encoder_forward.2} parent=5 // pred_region
      %s565 = ssub.s32 %s10, 2
      // Predicated region
      $region45: #{pconv_encoder_forward.2} parent=43 // pred_check
        %p566 = pneg %p133
      $region46: #{pconv_encoder_forward.2} parent=43 // pred_check_branch
        %568 = sbr.rel (%p566) target = $region48
      $region47: #{pconv_encoder_forward.2} parent=43 // pred_region
        %p569 = scmp.lt.s32.totalorder %s16, 1
        %s570 = scalar_select %p569, %s16, 1
        %s571 = smul.addr %s570, 8
        %s572 = scalar_lea.vmem %s4, %s571
      $region48: #{pconv_encoder_forward.2} parent=43 // pred_fallthru
        _
    $region44: #{pconv_encoder_forward.2} parent=5 // pred_fallthru
      _
  $region6: #{pconv_encoder_forward.2} parent=0 // loop_footer
    %s14 = sadd.s32 1, %s10
  $region7: #{pconv_encoder_forward.2} parent=0 // loop_footer_branch
    %9 = sbr.rel target = $region3
  $region8: #{pconv_encoder_forward.2} parent=0 // loop_exit
    _

</llo_original>
